<compile_context>
chip_gen: v6e
topology: v6e:2x2x1
jax: 0.10.0
libtpu: 0.0.40
codegen_flags: <defaults>
</compile_context>

<pallas_src>
import jax
import jax.numpy as jnp
from jax.experimental import pallas as pl
from jax.experimental.pallas import tpu as pltpu


def _round_up(x, m):
    return ((x + m - 1) // m) * m


def _patch_embed_kernel(x_ref, w_ref, b_ref, o_ref):
    # x_ref: (tm, K) patch rows, w_ref: (K, Np), b_ref: (1, Np) f32, o_ref: (tm, Np)
    acc = jnp.dot(x_ref[...], w_ref[...], preferred_element_type=jnp.float32)
    o_ref[...] = (acc + b_ref[...]).astype(o_ref.dtype)


def patch_embed_matmul(patches, weight, bias, *, tm=1024, out_dtype=None,
                       vmem_cap_bytes=48 * 1024 * 1024):
    """patches: (M, K), weight: (K, N), bias: (N,) -> (M, N).

    patches/weight should already be in the desired compute dtype (e.g. bf16);
    accumulation is always f32.  out_dtype defaults to f32.
    """
    M, K = patches.shape
    K2, N = weight.shape
    assert K == K2
    if out_dtype is None:
        out_dtype = jnp.float32

    in_itemsize = jnp.dtype(patches.dtype).itemsize
    out_itemsize = jnp.dtype(out_dtype).itemsize

    # Sublane-packing granularity for the row tile: 8 for 32-bit, 16 for bf16,
    # 32 for int8/fp8.
    gran = max(8, 32 // in_itemsize)

    # Lane-dense contraction / output dims.  Only pad when misaligned
    # (standard ViT K=768, N=768 is already aligned -> no copies at all).
    K_pad = _round_up(K, 128)
    N_pad = _round_up(N, 128)
    if K_pad != K:
        patches = jnp.pad(patches, ((0, 0), (0, K_pad - K)))
        weight = jnp.pad(weight, ((0, K_pad - K), (0, 0)))
    if N_pad != N:
        weight = jnp.pad(weight, ((0, 0), (0, N_pad - N)))
        bias = jnp.pad(bias, (0, N_pad - N))
    bias2d = bias.reshape(1, N_pad).astype(jnp.float32)

    # Row tile: as large as the budget allows, clamped for tiny problems,
    # clamped to ceil(M/2) so the parallel axis has >= 2 steps (v7x megacore),
    # rounded to the sublane-packing granularity.
    tm_eff = min(tm, _round_up(M, gran))
    if M > gran:
        tm_eff = min(tm_eff, _round_up(pl.cdiv(M, 2), gran))
    tm_eff = max(gran, (tm_eff // gran) * gran)

    def _vmem_bytes(t):
        return (2 * t * K_pad * in_itemsize          # double-buffered x tile
                + K_pad * N_pad * in_itemsize        # resident weight
                + N_pad * 4                          # resident bias
                + 2 * t * N_pad * out_itemsize)      # double-buffered out tile

    budget = int(vmem_cap_bytes * 0.8)
    while tm_eff > gran and _vmem_bytes(tm_eff) > budget:
        tm_eff = max(gran, (tm_eff // 2 // gran) * gran)

    grid = (pl.cdiv(M, tm_eff),)
    vmem_limit = int(min(vmem_cap_bytes,
                         max(16 * 1024 * 1024, _vmem_bytes(tm_eff) * 3 // 2)))

    cost = pl.CostEstimate(
        flops=2 * M * K_pad * N_pad,
        transcendentals=0,
        bytes_accessed=(M * K_pad * in_itemsize
                        + K_pad * N_pad * in_itemsize
                        + N_pad * 4
                        + M * N_pad * out_itemsize),
    )

    out = pl.pallas_call(
        _patch_embed_kernel,
        # No M padding: the ragged last block (if any) is masked by Pallas on
        # the output store, so no pad/slice copies of the activations.
        out_shape=jax.ShapeDtypeStruct((M, N_pad), out_dtype),
        grid_spec=pltpu.PrefetchScalarGridSpec(
            num_scalar_prefetch=0,
            grid=grid,
            in_specs=[
                pl.BlockSpec((tm_eff, K_pad), lambda i: (i, 0)),
                # Weight and bias never change across grid steps: keep them
                # resident with a single buffer (no double-buffering).
                pl.BlockSpec((K_pad, N_pad), lambda i: (0, 0),
                             pipeline_mode=pl.Buffered(1)),
                pl.BlockSpec((1, N_pad), lambda i: (0, 0),
                             pipeline_mode=pl.Buffered(1)),
            ],
            out_specs=pl.BlockSpec((tm_eff, N_pad), lambda i: (i, 0)),
        ),
        compiler_params=pltpu.CompilerParams(
            dimension_semantics=("parallel",),
            vmem_limit_bytes=vmem_limit,
        ),
        cost_estimate=cost,
    )(patches, weight, bias2d)

    if N_pad != N:
        out = out[:, :N]
    return out


def patch_embed_forward(x, proj_weight, proj_bias, patch_size,
                        compute_dtype=jnp.bfloat16, out_dtype=None):
    """Reproduce PatchEmbed.forward.

    x: (B, C, T, H, W)                 -- PyTorch NCTHW convention
    proj_weight: (embed_dim, C, p, p)  -- PyTorch Conv2d weight layout
    proj_bias: (embed_dim,)
    Returns (out, T, W_out) with out: (B*T, num_patches, embed_dim).

    compute_dtype: MXU input dtype (default bf16, f32 accumulation); pass None
      for exact f32 compute.
    out_dtype: output dtype (default x.dtype to match the PyTorch module; pass
      jnp.bfloat16 when the consumer accepts it to halve output HBM traffic).
    """
    B, C, T, H, W = x.shape
    p = patch_size
    embed_dim = proj_weight.shape[0]
    Hp, Wp = H // p, W // p
    if out_dtype is None:
        out_dtype = x.dtype
    cd = x.dtype if compute_dtype is None else compute_dtype

    # im2col: 'b c t h w -> (b t) (hp wp) (c ph pw)'.  Cast first so the XLA
    # relayout copy is half-width; the splits/merges are free reshapes and the
    # single 7-D transpose is one fused copy.
    x7 = x.astype(cd).reshape(B, C, T, Hp, p, Wp, p)
    xp = jnp.transpose(x7, (0, 2, 3, 5, 1, 4, 6))        # (B, T, Hp, Wp, C, p, p)
    patches = xp.reshape(B * T * Hp * Wp, C * p * p)     # (M, K)

    # Conv weight (embed_dim, C, p, p) -> (K, N); tiny, handled at trace time.
    w_mat = proj_weight.reshape(embed_dim, C * p * p).T.astype(cd)

    out = patch_embed_matmul(patches, w_mat, proj_bias, out_dtype=out_dtype)
    out = out.reshape(B * T, Hp * Wp, embed_dim)   # == conv.flatten(2).transpose(1,2)
    return out, T, Wp


if __name__ == "__main__":
    # Small shapes consistent with the module: img_size=16, patch_size=8,
    # in_chans=4, embed_dim=32, batch=2, T=2.
    B, C, T, H, W = 2, 4, 2, 16, 16
    p = 8
    embed_dim = 32
    Hp, Wp = H // p, W // p

    key = jax.random.PRNGKey(0)
    kx, kw, kb = jax.random.split(key, 3)
    x = jax.random.normal(kx, (B, C, T, H, W), dtype=jnp.float32)
    proj_weight = jax.random.normal(kw, (embed_dim, C, p, p), dtype=jnp.float32) * 0.02
    proj_bias = jax.random.normal(kb, (embed_dim,), dtype=jnp.float32) * 0.02

    # Plain-JAX reference (exact f32 im2col + matmul == the Conv2d).
    x_bt = jnp.transpose(x, (0, 2, 1, 3, 4)).reshape(B * T, C, H, W)
    xr = x_bt.reshape(B * T, C, Hp, p, Wp, p)
    xr = jnp.transpose(xr, (0, 2, 4, 1, 3, 5)).reshape(B * T, Hp * Wp, C * p * p)
    ref = jnp.einsum("mpk,nk->mpn", xr, proj_weight.reshape(embed_dim, -1)) + proj_bias

    # Default path: bf16 MXU compute, f32 accumulation and output.
    out, t_out, w_out = patch_embed_forward(x, proj_weight, proj_bias, p)
    out = jax.block_until_ready(out)
    assert out.shape == (B * T, Hp * Wp, embed_dim)
    assert out.dtype == x.dtype
    assert t_out == T and w_out == Wp
    assert jnp.allclose(out, ref, atol=2e-2, rtol=2e-2), \
        float(jnp.max(jnp.abs(out - ref)))

    # Exact f32 compute path.
    out_f32, _, _ = patch_embed_forward(x, proj_weight, proj_bias, p,
                                        compute_dtype=None)
    out_f32 = jax.block_until_ready(out_f32)
    assert jnp.allclose(out_f32, ref, atol=1e-4, rtol=1e-4)

    print("KERNEL_OK")
</pallas_src>

<mosaic_0001>
module attributes {stable_mosaic.version = 11 : i64} {
  func.func @_patch_embed_kernel(%arg0: i32, %arg1: memref<16x256xbf16, #tpu.memory_space<vmem>>, %arg2: memref<256x128xbf16, #tpu.memory_space<vmem>>, %arg3: memref<1x128xf32, #tpu.memory_space<vmem>>, %arg4: memref<16x128xf32, #tpu.memory_space<vmem>>) attributes {dimension_semantics = [#tpu.dimension_semantics<parallel>], iteration_bounds = array<i64: 1>, scalar_prefetch = 0 : i64, scratch_operands = 0 : i64, tpu.core_type = #tpu.core_type<tc>, window_params = [{transform_indices = @transform_0, window_bounds = array<i64: 16, 256>}, {pipeline_mode = #tpu.pipeline_mode<synchronous>, transform_indices = @transform_1, window_bounds = array<i64: 256, 128>}, {pipeline_mode = #tpu.pipeline_mode<synchronous>, transform_indices = @transform_2, window_bounds = array<i64: 1, 128>}, {transform_indices = @transform_3, window_bounds = array<i64: 16, 128>}]} {
    %c0 = arith.constant 0 : index
    %c0_0 = arith.constant 0 : index
    %0 = vector.load %arg1[%c0, %c0_0] : memref<16x256xbf16, #tpu.memory_space<vmem>>, vector<16x256xbf16>
    %c0_1 = arith.constant 0 : index
    %c0_2 = arith.constant 0 : index
    %1 = vector.load %arg2[%c0_1, %c0_2] : memref<256x128xbf16, #tpu.memory_space<vmem>>, vector<256x128xbf16>
    %cst = arith.constant dense<0.000000e+00> : vector<16x128xf32>
    %2 = tpu.matmul %0, %1, %cst {dimension_numbers = #tpu.dot_dimension_numbers<[1], [0], [0], [1], [0, 0, 1, 1], [], []>} : vector<16x256xbf16>, vector<256x128xbf16>, vector<16x128xf32> -> vector<16x128xf32>
    %c0_3 = arith.constant 0 : index
    %c0_4 = arith.constant 0 : index
    %3 = vector.load %arg3[%c0_3, %c0_4] : memref<1x128xf32, #tpu.memory_space<vmem>>, vector<1x128xf32>
    %4 = vector.broadcast %3 : vector<1x128xf32> to vector<16x128xf32>
    %5 = arith.addf %2, %4 : vector<16x128xf32>
    %c0_5 = arith.constant 0 : index
    %c0_6 = arith.constant 0 : index
    %6 = vector.load %arg4[%c0_5, %c0_6] : memref<16x128xf32, #tpu.memory_space<vmem>>, vector<16x128xf32>
    tpu.vector_store %arg4[%c0_5, %c0_6], %5 {strides = array<i32>} : memref<16x128xf32, #tpu.memory_space<vmem>>, vector<16x128xf32>,
    return
  }
  func.func @transform_0(%arg0: i32) -> (i32, i32) {
    %c0_i32 = arith.constant 0 : i32
    %c0_i32_0 = arith.constant 0 : i32
    return %arg0, %c0_i32 : i32, i32
  }
  func.func @transform_1(%arg0: i32) -> (i32, i32) {
    %c0_i32 = arith.constant 0 : i32
    %c0_i32_0 = arith.constant 0 : i32
    %c0_i32_1 = arith.constant 0 : i32
    return %c0_i32, %c0_i32_0 : i32, i32
  }
  func.func @transform_2(%arg0: i32) -> (i32, i32) {
    %c0_i32 = arith.constant 0 : i32
    %c0_i32_0 = arith.constant 0 : i32
    %c0_i32_1 = arith.constant 0 : i32
    return %c0_i32, %c0_i32_0 : i32, i32
  }
  func.func @transform_3(%arg0: i32) -> (i32, i32) {
    %c0_i32 = arith.constant 0 : i32
    %c0_i32_0 = arith.constant 0 : i32
    return %arg0, %c0_i32 : i32, i32
  }
}

</mosaic_0001>

<llo_original>
// kernel: tpu_custom_call.1
$region0: #{tpu_custom_call.1}
  #allocation0 [shape = 'u32[]', space=smem, size = 0x4, offset = 0x4, fixed_abs, tag = 'smem constant byte address 0x4 - core index']
  #allocation1 [shape = 'u32[144,128]{1,0:T(1,128)}', space=vmem, size = 0x12000, scoped, tag = 'internal scratch']
  %s0 = inlined_call_operand.hbm [shape: bf16[16,256], index: 0, kind: input, shape index: {}]
  %s1 = inlined_call_operand.hbm [shape: bf16[256,128], index: 1, kind: input, shape index: {}]
  %s2 = inlined_call_operand.vmem [shape: f32[1,128], index: 2, kind: input, shape index: {}]
  %s3 = inlined_call_operand.hbm [shape: f32[16,128], index: 3, kind: output, shape index: {}]
  %s4 = sld [smem:[#allocation0]]
  $region30: #{tpu_custom_call.1} parent=0
    _
  %s6 = ssub.s32 1, %s4
  %s7 = scalar_select 0, %s6, %s4
  $region1: #{tpu_custom_call.1} parent=0
    #allocation2 [shape = 'u8[8192]{0}', space=vmem, size = 0x2000, scoped, tag = 'input window, operand 0, single buffered']
    #allocation3 [shape = 's32[1]{0}', space=sflag, size = 0x4, scoped, tag = 'scoped memory for tpu_custom_call.1']
    #allocation4 [shape = 's32[1]{0}', space=sflag, size = 0x4, scoped, tag = 'scoped memory for tpu_custom_call.1']
    #allocation5 [shape = 'u8[65536]{0}', space=vmem, size = 0x10000, scoped, tag = 'input window, operand 1, single buffered']
    #allocation6 [shape = 's32[1]{0}', space=sflag, size = 0x4, scoped, tag = 'scoped memory for tpu_custom_call.1']
    #allocation7 [shape = 'u8[8192]{0}', space=vmem, size = 0x2000, scoped, tag = 'output window, operand 0, single buffered']
    %8 = vsyncpa [#allocation3], 0
    %9 = vsyncpa [#allocation6], 0
    %10 = vsyncpa [#allocation4], 0
    // Predicated region
    $region2: #{tpu_custom_call.1} parent=1 // pred_check
      _
    $region3: #{tpu_custom_call.1} parent=1 // pred_check_branch
      %12 = sbr.rel (0) target = $region5
    $region4: #{tpu_custom_call.1} parent=1 // pred_region
      %s14 = ssub.s32 256, 256
      %15 = vsyncadd [#allocation3], %s14
      %s16 = sshll.u32 [#allocation2], 4
      %s17 = int_to_ptr.vmem [resolvable:$true] %s16
      %22 = dma.hbm_to_vmem [thread:$0]  %s0, 256, %s17, [#allocation3], 128, 128, 8
    $region5: #{tpu_custom_call.1} parent=1 // pred_fallthru
      _
    // Predicated region
    $region6: #{tpu_custom_call.1} parent=1 // pred_check
      _
    $region7: #{tpu_custom_call.1} parent=1 // pred_check_branch
      %24 = sbr.rel (0) target = $region9
    $region8: #{tpu_custom_call.1} parent=1 // pred_region
      %s26 = ssub.s32 2048, 2048
      %27 = vsyncadd [#allocation6], %s26
      %s28 = sshll.u32 [#allocation5], 4
      %s29 = int_to_ptr.vmem [resolvable:$true] %s28
      %34 = dma.hbm_to_vmem [thread:$0]  %s1, 2048, %s29, [#allocation6], 64, 64, 4
    $region9: #{tpu_custom_call.1} parent=1 // pred_fallthru
      _
    // Predicated region
    $region10: #{tpu_custom_call.1} parent=1 // pred_check
      _
    $region11: #{tpu_custom_call.1} parent=1 // pred_check_branch
      %36 = sbr.rel (0) target = $region13
    $region12: #{tpu_custom_call.1} parent=1 // pred_region
      _
    $region13: #{tpu_custom_call.1} parent=1 // pred_fallthru
      _
    // Predicated region
    $region14: #{tpu_custom_call.1} parent=1 // pred_check
      _
    $region15: #{tpu_custom_call.1} parent=1 // pred_check_branch
      %38 = sbr.rel (0) target = $region17
    $region16: #{tpu_custom_call.1} parent=1 // pred_region
      %39 = dma.done [#allocation3], 256
    $region17: #{tpu_custom_call.1} parent=1 // pred_fallthru
      _
    // Predicated region
    $region18: #{tpu_custom_call.1} parent=1 // pred_check
      _
    $region19: #{tpu_custom_call.1} parent=1 // pred_check_branch
      %41 = sbr.rel (0) target = $region21
    $region20: #{tpu_custom_call.1} parent=1 // pred_region
      %42 = dma.done [#allocation6], 2048
    $region21: #{tpu_custom_call.1} parent=1 // pred_fallthru
      _
    %v44 = vld [vmem:[#allocation2] sm:$0xff]
    %v45 = vld [vmem:[#allocation2 + $0x8] sm:$0xff]
    %v46 = vld [vmem:[#allocation5] sm:$0xf]
    %v47 = vld [vmem:[#allocation5 + $0x4] sm:$0xf]
    %v48 = vld [vmem:[#allocation5 + $0x8] sm:$0xf]
    %v49 = vld [vmem:[#allocation5 + $0xc] sm:$0xf]
    %v50 = vld [vmem:[#allocation5 + $0x10] sm:$0xf]
    %v51 = vld [vmem:[#allocation5 + $0x14] sm:$0xf]
    %v52 = vld [vmem:[#allocation5 + $0x18] sm:$0xf]
    %v53 = vld [vmem:[#allocation5 + $0x1c] sm:$0xf]
    %v54 = vld [vmem:[#allocation5 + $0x20] sm:$0xf]
    %v55 = vld [vmem:[#allocation5 + $0x24] sm:$0xf]
    %v56 = vld [vmem:[#allocation5 + $0x28] sm:$0xf]
    %v57 = vld [vmem:[#allocation5 + $0x2c] sm:$0xf]
    %v58 = vld [vmem:[#allocation5 + $0x30] sm:$0xf]
    %v59 = vld [vmem:[#allocation5 + $0x34] sm:$0xf]
    %v60 = vld [vmem:[#allocation5 + $0x38] sm:$0xf]
    %v61 = vld [vmem:[#allocation5 + $0x3c] sm:$0xf]
    %v62 = vld [vmem:[#allocation5 + $0x40] sm:$0xf]
    %v63 = vld [vmem:[#allocation5 + $0x44] sm:$0xf]
    %v64 = vld [vmem:[#allocation5 + $0x48] sm:$0xf]
    %v65 = vld [vmem:[#allocation5 + $0x4c] sm:$0xf]
    %v66 = vld [vmem:[#allocation5 + $0x50] sm:$0xf]
    %v67 = vld [vmem:[#allocation5 + $0x54] sm:$0xf]
    %v68 = vld [vmem:[#allocation5 + $0x58] sm:$0xf]
    %v69 = vld [vmem:[#allocation5 + $0x5c] sm:$0xf]
    %v70 = vld [vmem:[#allocation5 + $0x60] sm:$0xf]
    %v71 = vld [vmem:[#allocation5 + $0x64] sm:$0xf]
    %v72 = vld [vmem:[#allocation5 + $0x68] sm:$0xf]
    %v73 = vld [vmem:[#allocation5 + $0x6c] sm:$0xf]
    %v74 = vld [vmem:[#allocation5 + $0x70] sm:$0xf]
    %v75 = vld [vmem:[#allocation5 + $0x74] sm:$0xf]
    %v76 = vld [vmem:[#allocation5 + $0x78] sm:$0xf]
    %v77 = vld [vmem:[#allocation5 + $0x7c] sm:$0xf]
    %v78 = vld [vmem:[%s2] sm:$0x1]
    %v80 = vlaneseq
    %v81 = vshrl.u32 %v80, 7
    %v82 = vsub.s32 0, %v81
    %v83 = vrot.slane %v78, %v82
    %v87 = vunpack.c.l.b16 %v44
    %v88 = vunpack.c.h.b16 %v44
    %v89 = vunpack.c.l.b16 %v45
    %v90 = vunpack.c.h.b16 %v45
    %v91 = vpack.c.b16 %v89, %v87
    %v92 = vpack.c.b16 %v90, %v88
    %v127 = vunpack.c.l.b16 %v46
    %v128 = vunpack.c.l.b16 %v47
    %v129 = vunpack.c.l.b16 %v48
    %v130 = vunpack.c.l.b16 %v49
    %v131 = vunpack.c.l.b16 %v50
    %v132 = vunpack.c.l.b16 %v51
    %v133 = vunpack.c.l.b16 %v52
    %v134 = vunpack.c.l.b16 %v53
    %v135 = vunpack.c.l.b16 %v54
    %v136 = vunpack.c.l.b16 %v55
    %v137 = vunpack.c.l.b16 %v56
    %v138 = vunpack.c.l.b16 %v57
    %v139 = vunpack.c.l.b16 %v58
    %v140 = vunpack.c.l.b16 %v59
    %v141 = vunpack.c.l.b16 %v60
    %v142 = vunpack.c.l.b16 %v61
    %v143 = vunpack.c.l.b16 %v62
    %v144 = vunpack.c.l.b16 %v63
    %v145 = vunpack.c.l.b16 %v64
    %v146 = vunpack.c.l.b16 %v65
    %v147 = vunpack.c.l.b16 %v66
    %v148 = vunpack.c.l.b16 %v67
    %v149 = vunpack.c.l.b16 %v68
    %v150 = vunpack.c.l.b16 %v69
    %v151 = vunpack.c.l.b16 %v70
    %v152 = vunpack.c.l.b16 %v71
    %v153 = vunpack.c.l.b16 %v72
    %v154 = vunpack.c.l.b16 %v73
    %v155 = vunpack.c.l.b16 %v74
    %v156 = vunpack.c.l.b16 %v75
    %v157 = vunpack.c.l.b16 %v76
    %v158 = vunpack.c.l.b16 %v77
    %v159 = vpack.c.b16 %v128, %v127
    %v160 = vpack.c.b16 %v130, %v129
    %v161 = vpack.c.b16 %v132, %v131
    %v162 = vpack.c.b16 %v134, %v133
    %v163 = vpack.c.b16 %v136, %v135
    %v164 = vpack.c.b16 %v138, %v137
    %v165 = vpack.c.b16 %v140, %v139
    %v166 = vpack.c.b16 %v142, %v141
    %v167 = vpack.c.b16 %v144, %v143
    %v168 = vpack.c.b16 %v146, %v145
    %v169 = vpack.c.b16 %v148, %v147
    %v170 = vpack.c.b16 %v150, %v149
    %v171 = vpack.c.b16 %v152, %v151
    %v172 = vpack.c.b16 %v154, %v153
    %v173 = vpack.c.b16 %v156, %v155
    %v174 = vpack.c.b16 %v158, %v157
    %191 = vmatprep.subr.bf16.mxu0 0
    %192 = vmatpush1.bf16.msra.mxu0 %v166
    %193 = vmatprep.subr.bf16.mxu0 0
    %194 = vmatpush1.bf16.msra.mxu0 %v165
    %195 = vmatprep.subr.bf16.mxu0 0
    %196 = vmatpush1.bf16.msra.mxu0 %v164
    %197 = vmatprep.subr.bf16.mxu0 0
    %198 = vmatpush1.bf16.msra.mxu0 %v163
    %199 = vmatprep.subr.bf16.mxu0 0
    %200 = vmatpush1.bf16.msra.mxu0 %v162
    %201 = vmatprep.subr.bf16.mxu0 0
    %202 = vmatpush1.bf16.msra.mxu0 %v161
    %203 = vmatprep.subr.bf16.mxu0 0
    %204 = vmatpush1.bf16.msra.mxu0 %v160
    %205 = vmatprep.subr.bf16.mxu0 0
    %206 = vmatpush1.bf16.msra.mxu0 %v159
    %207 = vmatprep.subr.bf16.mxu0 0
    %208 = vmatpush2.bf16.msra.mxu0 %v174
    %209 = vmatprep.subr.bf16.mxu0 0
    %210 = vmatpush2.bf16.msra.mxu0 %v173
    %211 = vmatprep.subr.bf16.mxu0 0
    %212 = vmatpush2.bf16.msra.mxu0 %v172
    %213 = vmatprep.subr.bf16.mxu0 0
    %214 = vmatpush2.bf16.msra.mxu0 %v171
    %215 = vmatprep.subr.bf16.mxu0 0
    %216 = vmatpush2.bf16.msra.mxu0 %v170
    %217 = vmatprep.subr.bf16.mxu0 0
    %218 = vmatpush2.bf16.msra.mxu0 %v169
    %219 = vmatprep.subr.bf16.mxu0 0
    %220 = vmatpush2.bf16.msra.mxu0 %v168
    %221 = vmatprep.subr.bf16.mxu0 0
    %222 = vmatpush2.bf16.msra.mxu0 %v167
    %223 = vmatprep.mubr.bf16.mxu0 %v92
    %224 = vmatmul.mubr.bf16.gmra.mxu0 %v91
    %v225 = vpop.f32.mrf.mxu0
    %v226 = vadd.f32 %v83, %v225
    %v227 = vpop.f32.mrf.mxu0
    %v228 = vpop.f32.mrf.mxu0
    %v229 = vadd.f32 %v83, %v228
    %v230 = vpop.f32.mrf.mxu0
    %231 = vdwg.mxu0
    %232 = vst [vmem:[#allocation7] sm:$0xff] %v226
    %233 = vst [vmem:[#allocation7 + $0x8] sm:$0xff] %v229
    // Predicated region
    $region22: #{tpu_custom_call.1} parent=1 // pred_check
      _
    $region23: #{tpu_custom_call.1} parent=1 // pred_check_branch
      %235 = sbr.rel (0) target = $region25
    $region24: #{tpu_custom_call.1} parent=1 // pred_region
      %s237 = ssub.s32 256, 256
      %238 = vsyncadd [#allocation4], %s237
      %s239 = sshll.u32 [#allocation7], 4
      %s240 = int_to_ptr.vmem [resolvable:$true] %s239
      %245 = dma.vmem_to_hbm [thread:$0]  %s240, 256, %s3, [#allocation4], 128, 128, 8
    $region25: #{tpu_custom_call.1} parent=1 // pred_fallthru
      _
    // Predicated region
    $region26: #{tpu_custom_call.1} parent=1 // pred_check
      _
    $region27: #{tpu_custom_call.1} parent=1 // pred_check_branch
      %247 = sbr.rel (0) target = $region29
    $region28: #{tpu_custom_call.1} parent=1 // pred_region
      %248 = dma.done [#allocation4], 256
    $region29: #{tpu_custom_call.1} parent=1 // pred_fallthru
      _
    %249 = vsyncpa [#allocation3], 1
    %250 = vsyncpa [#allocation6], 1
    %251 = vsyncpa [#allocation4], 1

</llo_original>
